<compile_context>
chip_gen: v7x
topology: tpu7x:2x2x1
jax: 0.10.0
libtpu: 0.0.40
codegen_flags: <defaults>
</compile_context>

<pallas_src>
import functools

import jax
import jax.numpy as jnp
from jax.experimental import pallas as pl
from jax.experimental.pallas import tpu as pltpu


def _tile_row_loss(adc, pmask, not_self, pos_cnt):
    """Shared per-tile math: one full-width exp, divisions kept [TB, 1] wide."""
    row_max = jnp.max(adc, axis=1, keepdims=True)            # [TB, 1]
    logits = adc - row_max                                    # [TB, Nc]
    e = jnp.exp(logits)                                       # single full-width exp
    if not_self is not None:
        e = e * not_self                                      # exp_logits * logits_mask
    denom = jnp.sum(e, axis=1, keepdims=True)                 # [TB, 1]
    pos_sum = jnp.sum(pmask * logits, axis=1, keepdims=True)  # [TB, 1]
    # loss_i = log(denom_i) - pos_sum_i / pos_cnt_i.  Rows with pos_cnt == 0 give
    # NaN exactly like the PyTorch reference.
    return jnp.log(denom) - pos_sum / pos_cnt


def _supcon_labels_kernel(rowlab_ref, collab_ref, poscnt_ref, anchor_ref, ct_ref,
                          out_ref, *, inv_temp, mask_self, tile_rows):
    """One grid step: `tile_rows` anchor rows vs ALL contrast columns (labels path)."""
    # Scale anchors by 1/T before the matmul (cheap [TB, d] op).
    a = anchor_ref[...].astype(jnp.float32) * jnp.float32(inv_temp)   # [TB, D]
    ct = ct_ref[...].astype(jnp.float32)                               # [D, Nc]
    adc = jnp.dot(a, ct, preferred_element_type=jnp.float32)           # [TB, Nc] (MXU)

    # Positive-pair mask rebuilt in-kernel from labels -> no [na, nc] HBM stream.
    pmask = (rowlab_ref[...] == collab_ref[...]).astype(jnp.float32)   # [TB,1]==[1,Nc]

    not_self = None
    if mask_self:
        # Self-comparison mask (1 - eye on the GLOBAL anchor-row index) from iotas.
        row0 = pl.program_id(0) * tile_rows
        rows = row0 + jax.lax.broadcasted_iota(jnp.int32, adc.shape, 0)
        cols = jax.lax.broadcasted_iota(jnp.int32, adc.shape, 1)
        not_self = (rows != cols).astype(jnp.float32)
        pmask = pmask * not_self

    out_ref[...] = _tile_row_loss(adc, pmask, not_self, poscnt_ref[...])


def _supcon_mask_kernel(pmask_ref, poscnt_ref, anchor_ref, ct_ref, out_ref, *,
                        inv_temp, mask_self, tile_rows):
    """Fallback for a user-supplied (possibly asymmetric) [bsz, bsz] mask."""
    a = anchor_ref[...].astype(jnp.float32) * jnp.float32(inv_temp)
    adc = jnp.dot(a, ct_ref[...].astype(jnp.float32),
                  preferred_element_type=jnp.float32)
    pmask = pmask_ref[...].astype(jnp.float32)
    not_self = None
    if mask_self:
        row0 = pl.program_id(0) * tile_rows
        rows = row0 + jax.lax.broadcasted_iota(jnp.int32, adc.shape, 0)
        cols = jax.lax.broadcasted_iota(jnp.int32, adc.shape, 1)
        not_self = (rows != cols).astype(jnp.float32)
        pmask = pmask * not_self
    out_ref[...] = _tile_row_loss(adc, pmask, not_self, poscnt_ref[...])


def _pick_tile_rows(na, target, fits):
    """Largest row tile <= target that divides na, obeys the (8,128) rule, fits
    VMEM, and (when possible) yields >= 2 grid steps for megacore balance."""
    divs = [t for t in range(1, na + 1)
            if na % t == 0 and (t % 8 == 0 or t == na)]
    multi = [t for t in divs if t <= target and fits(t) and na // t >= 2]
    if multi:
        return max(multi)
    ok = [t for t in divs if t <= target and fits(t)]
    if ok:
        return max(ok)
    return min(divs)


def supcon_loss(features, labels=None, mask=None, *,
                temperature=0.07, contrast_mode='all', block_rows=256):
    """Forward pass of SupConLoss (matches the PyTorch module semantics)."""
    features = jnp.asarray(features)
    if features.ndim < 3:
        raise ValueError('`features` needs to be [bsz, n_views, ...], '
                         'at least 3 dimensions are required')
    if features.ndim > 3:
        features = features.reshape(features.shape[0], features.shape[1], -1)
    bsz, n_views, d = features.shape

    if labels is not None and mask is not None:
        raise ValueError('Cannot define both `labels` and `mask`')

    use_labels = mask is None
    if use_labels:
        if labels is None:
            lab = jnp.arange(bsz, dtype=jnp.int32)   # eye(bsz) == "labels are indices"
        else:
            lab = jnp.asarray(labels).reshape(-1).astype(jnp.int32)
            if lab.shape[0] != bsz:
                raise ValueError('Num of labels does not match num of features')
        base_row_sum = jnp.sum((lab[:, None] == lab[None, :]).astype(jnp.float32), axis=1)
        base_diag = jnp.ones((bsz,), jnp.float32)
        base_mask = None
    else:
        base_mask = jnp.asarray(mask, jnp.float32)
        base_row_sum = jnp.sum(base_mask, axis=1)
        base_diag = jnp.diagonal(base_mask)

    # torch.cat(torch.unbind(features, dim=1), dim=0): view-major stacking.
    contrast_feature = jnp.concatenate([features[:, v] for v in range(n_views)],
                                       axis=0)                       # [n_views*bsz, d]
    if contrast_mode == 'one':
        anchor_feature, cfeat = features[:, 0], contrast_feature
        anchor_count, contrast_count, mask_self = 1, n_views, True
    elif contrast_mode == 'all':
        anchor_feature, cfeat = contrast_feature, contrast_feature
        anchor_count, contrast_count, mask_self = n_views, n_views, True
    elif contrast_mode == 'proxy':
        anchor_feature, cfeat = features[:, 0], features[:, 1]
        anchor_count, contrast_count, mask_self = 1, 1, False
    else:
        raise ValueError('Unknown mode: {}'.format(contrast_mode))

    na, nc = anchor_feature.shape[0], cfeat.shape[0]

    # Positive counts per anchor row, precomputed host-side from [bsz] row sums.
    pos_cnt = contrast_count * base_row_sum - (base_diag if mask_self else 0.0)
    pos_cnt = jnp.tile(pos_cnt, anchor_count).reshape(na, 1).astype(jnp.float32)

    # Zero-pad the feature dim to a multiple of 128 (lane-dense loads / full MXU K);
    # zero columns/rows do not change the dot products.
    d_pad = max(128, ((d + 127) // 128) * 128)

    def pad_d(x):
        return x if x.shape[-1] == d_pad else jnp.pad(x, ((0, 0), (0, d_pad - x.shape[-1])))

    anchor_p = pad_d(anchor_feature.astype(jnp.float32))              # [na, d_pad]
    ct = pad_d(cfeat.astype(jnp.float32)).T                           # [d_pad, nc] pre-transposed RHS

    # Tile sizing from the chip's actual per-core VMEM capacity (v7x: 64 MiB).
    try:
        vmem_cap = int(pltpu.get_tpu_info().vmem_capacity_bytes)
    except Exception:
        vmem_cap = 64 * 1024 * 1024
    budget = vmem_cap - 8 * 1024 * 1024                               # headroom

    def vmem_est(t):
        # double-buffered anchor tile + resident contrastᵀ (2 bufs) + ~8 full-width
        # [t, nc] f32 temps (adc/logits/e/pmask/not_self/products) + small vectors.
        return 4 * (2 * t * d_pad + 2 * d_pad * nc + 8 * t * nc + 2 * nc + 8 * t)

    tb = _pick_tile_rows(na, min(block_rows, na), lambda t: vmem_est(t) <= budget)
    num_tiles = na // tb
    vmem_limit = int(min(vmem_cap, max(2 * vmem_est(tb), 32 * 1024 * 1024)))

    bytes_accessed = 4 * (na * d_pad + d_pad * nc + 3 * na + nc)
    if not use_labels:
        bytes_accessed += 4 * na * nc                                 # dense-mask fallback stream

    common = dict(
        grid=(num_tiles,),
        out_specs=pl.BlockSpec((tb, 1), lambda i: (i, 0)),
        out_shape=jax.ShapeDtypeStruct((na, 1), jnp.float32),
        compiler_params=pltpu.CompilerParams(
            dimension_semantics=("parallel",),
            vmem_limit_bytes=vmem_limit),
        cost_estimate=pl.CostEstimate(
            flops=2 * na * nc * d_pad,
            transcendentals=na * nc + na,
            bytes_accessed=bytes_accessed),
    )

    if use_labels:
        row_lab = jnp.tile(lab, anchor_count).reshape(na, 1)          # [na, 1] int32
        col_lab = jnp.tile(lab, contrast_count).reshape(1, nc)        # [1, nc] int32
        kernel = functools.partial(_supcon_labels_kernel,
                                   inv_temp=1.0 / float(temperature),
                                   mask_self=mask_self, tile_rows=tb)
        loss_rows = pl.pallas_call(
            kernel,
            in_specs=[
                pl.BlockSpec((tb, 1), lambda i: (i, 0)),       # anchor-row labels
                pl.BlockSpec((1, nc), lambda i: (0, 0)),       # contrast-col labels (resident)
                pl.BlockSpec((tb, 1), lambda i: (i, 0)),       # positive counts
                pl.BlockSpec((tb, d_pad), lambda i: (i, 0)),   # anchor rows tile
                pl.BlockSpec((d_pad, nc), lambda i: (0, 0)),   # contrastᵀ (VMEM-resident)
            ],
            **common,
        )(row_lab, col_lab, pos_cnt, anchor_p, ct)
    else:
        # TODO(synk): keep the tiny [bsz, bsz] base_mask resident and gather
        # (row % bsz, col % bsz) in-kernel to drop this [na, nc] stream too.
        pmask = jnp.tile(base_mask, (anchor_count, contrast_count))   # [na, nc]
        kernel = functools.partial(_supcon_mask_kernel,
                                   inv_temp=1.0 / float(temperature),
                                   mask_self=mask_self, tile_rows=tb)
        loss_rows = pl.pallas_call(
            kernel,
            in_specs=[
                pl.BlockSpec((tb, nc), lambda i: (i, 0)),      # dense positive-mask tile
                pl.BlockSpec((tb, 1), lambda i: (i, 0)),       # positive counts
                pl.BlockSpec((tb, d_pad), lambda i: (i, 0)),   # anchor rows tile
                pl.BlockSpec((d_pad, nc), lambda i: (0, 0)),   # contrastᵀ (VMEM-resident)
            ],
            **common,
        )(pmask, pos_cnt, anchor_p, ct)

    # loss.view(anchor_count, batch_size).mean() == mean over all na anchor rows.
    return jnp.sum(loss_rows) / na


def _reference_supcon(features, labels=None, mask=None, *,
                      temperature=0.07, contrast_mode='all'):
    """Pure-JAX mirror of the PyTorch SupConLoss.forward, for validation."""
    if features.ndim > 3:
        features = features.reshape(features.shape[0], features.shape[1], -1)
    bsz, n_views = features.shape[0], features.shape[1]
    if labels is None and mask is None:
        mask = jnp.eye(bsz, dtype=jnp.float32)
    elif labels is not None:
        labels = jnp.asarray(labels).reshape(-1, 1)
        mask = (labels == labels.T).astype(jnp.float32)
    else:
        mask = jnp.asarray(mask, jnp.float32)
    contrast_count = n_views
    contrast_feature = jnp.concatenate([features[:, v] for v in range(n_views)], axis=0)
    if contrast_mode == 'one':
        anchor_feature, anchor_count = features[:, 0], 1
    elif contrast_mode == 'all':
        anchor_feature, anchor_count = contrast_feature, contrast_count
    elif contrast_mode == 'proxy':
        anchor_feature, contrast_feature = features[:, 0], features[:, 1]
        anchor_count, contrast_count = 1, 1
    adc = (anchor_feature @ contrast_feature.T) / temperature
    logits = adc - jnp.max(adc, axis=1, keepdims=True)
    mask = jnp.tile(mask, (anchor_count, contrast_count))
    n_rows = anchor_feature.shape[0]
    logits_mask = jnp.ones_like(mask).at[jnp.arange(n_rows), jnp.arange(n_rows)].set(0.0)
    if contrast_mode == 'proxy':
        exp_logits = jnp.exp(logits)
    else:
        mask = mask * logits_mask
        exp_logits = jnp.exp(logits) * logits_mask
    log_prob = logits - jnp.log(exp_logits.sum(1, keepdims=True))
    mean_log_prob_pos = (mask * log_prob).sum(1) / mask.sum(1)
    loss = -mean_log_prob_pos
    return loss.reshape(anchor_count, bsz).mean()


if __name__ == "__main__":
    key = jax.random.PRNGKey(0)
    bsz, n_views, ch, sp = 8, 2, 4, 8          # features flatten to d = 32
    feats = jax.random.normal(key, (bsz, n_views, ch, sp), jnp.float32)
    # L2-normalize flattened feature vectors (standard for SupCon embeddings).
    flat = feats.reshape(bsz, n_views, -1)
    flat = flat / jnp.linalg.norm(flat, axis=-1, keepdims=True)
    feats = flat.reshape(bsz, n_views, ch, sp)
    labels = jnp.array([0, 1, 2, 3, 0, 1, 2, 3], jnp.int32)

    # Supervised case (labels). Small block_rows so the grid has >1 (even) steps.
    loss_sup = supcon_loss(feats, labels=labels, temperature=0.07,
                           contrast_mode='all', block_rows=8)
    jax.block_until_ready(loss_sup)
    ref_sup = _reference_supcon(feats, labels=labels, temperature=0.07,
                                contrast_mode='all')
    assert jnp.allclose(loss_sup, ref_sup, rtol=1e-4, atol=1e-4), (loss_sup, ref_sup)

    # Unsupervised SimCLR degenerate case (labels=None, mask=None).
    loss_unsup = supcon_loss(feats, temperature=0.07, contrast_mode='all')
    jax.block_until_ready(loss_unsup)
    ref_unsup = _reference_supcon(feats, temperature=0.07, contrast_mode='all')
    assert jnp.allclose(loss_unsup, ref_unsup, rtol=1e-4, atol=1e-4), (loss_unsup, ref_unsup)

    # Proxy mode (no self-mask path).
    loss_proxy = supcon_loss(feats, labels=labels, temperature=0.07,
                             contrast_mode='proxy')
    jax.block_until_ready(loss_proxy)
    ref_proxy = _reference_supcon(feats, labels=labels, temperature=0.07,
                                  contrast_mode='proxy')
    assert jnp.allclose(loss_proxy, ref_proxy, rtol=1e-4, atol=1e-4), (loss_proxy, ref_proxy)

    print("KERNEL_OK")
</pallas_src>

<mosaic_0001>
module attributes {stable_mosaic.version = 11 : i64} {
  func.func @_supcon_labels_kernel(%arg0: i32, %arg1: memref<8x1xi32, #tpu.memory_space<vmem>>, %arg2: memref<1x16xi32, #tpu.memory_space<vmem>>, %arg3: memref<8x1xf32, #tpu.memory_space<vmem>>, %arg4: memref<8x128xf32, #tpu.memory_space<vmem>>, %arg5: memref<128x16xf32, #tpu.memory_space<vmem>>, %arg6: memref<8x1xf32, #tpu.memory_space<vmem>>) attributes {dimension_semantics = [#tpu.dimension_semantics<parallel>], iteration_bounds = array<i64: 2>, scalar_prefetch = 0 : i64, scratch_operands = 0 : i64, tpu.core_type = #tpu.core_type<tc>, window_params = [{transform_indices = @transform_0, window_bounds = array<i64: 8, 1>}, {pipeline_mode = #tpu.pipeline_mode<synchronous>, transform_indices = @transform_1, window_bounds = array<i64: 1, 16>}, {transform_indices = @transform_2, window_bounds = array<i64: 8, 1>}, {transform_indices = @transform_3, window_bounds = array<i64: 8, 128>}, {pipeline_mode = #tpu.pipeline_mode<synchronous>, transform_indices = @transform_4, window_bounds = array<i64: 128, 16>}, {transform_indices = @transform_5, window_bounds = array<i64: 8, 1>}]} {
    %c0 = arith.constant 0 : index
    %c0_0 = arith.constant 0 : index
    %0 = vector.load %arg4[%c0, %c0_0] : memref<8x128xf32, #tpu.memory_space<vmem>>, vector<8x128xf32>
    %cst = arith.constant 14.2857141 : f32
    %1 = vector.broadcast %cst : f32 to vector<8x128xf32>
    %2 = arith.mulf %0, %1 : vector<8x128xf32>
    %c0_1 = arith.constant 0 : index
    %c0_2 = arith.constant 0 : index
    %3 = vector.load %arg5[%c0_1, %c0_2] : memref<128x16xf32, #tpu.memory_space<vmem>>, vector<128x16xf32>
    %cst_3 = arith.constant dense<0.000000e+00> : vector<8x16xf32>
    %4 = tpu.matmul %2, %3, %cst_3 {dimension_numbers = #tpu.dot_dimension_numbers<[1], [0], [0], [1], [0, 0, 1, 1], [], []>} : vector<8x128xf32>, vector<128x16xf32>, vector<8x16xf32> -> vector<8x16xf32>
    %c0_4 = arith.constant 0 : index
    %c0_5 = arith.constant 0 : index
    %5 = vector.load %arg1[%c0_4, %c0_5] : memref<8x1xi32, #tpu.memory_space<vmem>>, vector<8x1xi32>
    %c0_6 = arith.constant 0 : index
    %c0_7 = arith.constant 0 : index
    %6 = vector.load %arg2[%c0_6, %c0_7] : memref<1x16xi32, #tpu.memory_space<vmem>>, vector<1x16xi32>
    %7 = vector.broadcast %5 : vector<8x1xi32> to vector<8x16xi32>
    %8 = vector.broadcast %6 : vector<1x16xi32> to vector<8x16xi32>
    %9 = arith.cmpi eq, %7, %8 : vector<8x16xi32>
    %10 = arith.extui %9 : vector<8x16xi1> to vector<8x16xi32>
    %11 = arith.sitofp %10 : vector<8x16xi32> to vector<8x16xf32>
    %c8_i32 = arith.constant 8 : i32
    %12 = arith.muli %arg0, %c8_i32 : i32
    %13 = tpu.iota {dimensions = array<i32: 0>} : vector<8x16xi32>
    %14 = vector.broadcast %12 : i32 to vector<8x16xi32>
    %15 = arith.addi %14, %13 : vector<8x16xi32>
    %16 = tpu.iota {dimensions = array<i32: 1>} : vector<8x16xi32>
    %17 = arith.cmpi ne, %15, %16 : vector<8x16xi32>
    %18 = arith.extui %17 : vector<8x16xi1> to vector<8x16xi32>
    %19 = arith.sitofp %18 : vector<8x16xi32> to vector<8x16xf32>
    %20 = arith.mulf %11, %19 : vector<8x16xf32>
    %c0_8 = arith.constant 0 : index
    %c0_9 = arith.constant 0 : index
    %21 = vector.load %arg3[%c0_8, %c0_9] : memref<8x1xf32, #tpu.memory_space<vmem>>, vector<8x1xf32>
    %cst_10 = arith.constant dense<0xFF800000> : vector<8xf32>
    %22 = vector.multi_reduction <maximumf>, %4, %cst_10 [1] : vector<8x16xf32> to vector<8xf32>
    %23 = vector.shape_cast %22 : vector<8xf32> to vector<8x1xf32>
    %24 = vector.broadcast %23 : vector<8x1xf32> to vector<8x16xf32>
    %25 = arith.subf %4, %24 : vector<8x16xf32>
    %26 = math.exp %25 : vector<8x16xf32>
    %27 = arith.mulf %26, %19 : vector<8x16xf32>
    %cst_11 = arith.constant dense<0.000000e+00> : vector<8xf32>
    %28 = vector.multi_reduction <add>, %27, %cst_11 [1] : vector<8x16xf32> to vector<8xf32>
    %29 = vector.shape_cast %28 : vector<8xf32> to vector<8x1xf32>
    %30 = arith.mulf %20, %25 : vector<8x16xf32>
    %cst_12 = arith.constant dense<0.000000e+00> : vector<8xf32>
    %31 = vector.multi_reduction <add>, %30, %cst_12 [1] : vector<8x16xf32> to vector<8xf32>
    %32 = vector.shape_cast %31 : vector<8xf32> to vector<8x1xf32>
    %33 = math.log %29 : vector<8x1xf32>
    %34 = arith.divf %32, %21 : vector<8x1xf32>
    %35 = arith.subf %33, %34 : vector<8x1xf32>
    %c0_13 = arith.constant 0 : index
    %c0_14 = arith.constant 0 : index
    %36 = vector.load %arg6[%c0_13, %c0_14] : memref<8x1xf32, #tpu.memory_space<vmem>>, vector<8x1xf32>
    tpu.vector_store %arg6[%c0_13, %c0_14], %35 {strides = array<i32>} : memref<8x1xf32, #tpu.memory_space<vmem>>, vector<8x1xf32>,
    return
  }
  func.func @transform_0(%arg0: i32) -> (i32, i32) {
    %c0_i32 = arith.constant 0 : i32
    %c0_i32_0 = arith.constant 0 : i32
    return %arg0, %c0_i32 : i32, i32
  }
  func.func @transform_1(%arg0: i32) -> (i32, i32) {
    %c0_i32 = arith.constant 0 : i32
    %c0_i32_0 = arith.constant 0 : i32
    %c0_i32_1 = arith.constant 0 : i32
    return %c0_i32, %c0_i32_0 : i32, i32
  }
  func.func @transform_2(%arg0: i32) -> (i32, i32) {
    %c0_i32 = arith.constant 0 : i32
    %c0_i32_0 = arith.constant 0 : i32
    return %arg0, %c0_i32 : i32, i32
  }
  func.func @transform_3(%arg0: i32) -> (i32, i32) {
    %c0_i32 = arith.constant 0 : i32
    %c0_i32_0 = arith.constant 0 : i32
    return %arg0, %c0_i32 : i32, i32
  }
  func.func @transform_4(%arg0: i32) -> (i32, i32) {
    %c0_i32 = arith.constant 0 : i32
    %c0_i32_0 = arith.constant 0 : i32
    %c0_i32_1 = arith.constant 0 : i32
    return %c0_i32, %c0_i32_0 : i32, i32
  }
  func.func @transform_5(%arg0: i32) -> (i32, i32) {
    %c0_i32 = arith.constant 0 : i32
    %c0_i32_0 = arith.constant 0 : i32
    return %arg0, %c0_i32 : i32, i32
  }
}

</mosaic_0001>

<llo_original>
// kernel: tpu_custom_call.1
$region0: #{tpu_custom_call.1}
  #allocation0 [shape = 'u32[]', space=smem, size = 0x4, offset = 0x4, fixed_abs, tag = 'smem constant byte address 0x4 - core index']
  #allocation1 [shape = 'u32[144,128]{1,0:T(1,128)}', space=vmem, size = 0x12000, scoped, tag = 'internal scratch']
  %s0 = inlined_call_operand.vmem [shape: s32[16,1], index: 0, kind: input, shape index: {}]
  %s1 = inlined_call_operand.vmem [shape: s32[1,16], index: 1, kind: input, shape index: {}]
  %s2 = inlined_call_operand.vmem [shape: f32[16,1], index: 2, kind: input, shape index: {}]
  %s3 = inlined_call_operand.vmem [shape: f32[16,128], index: 3, kind: input, shape index: {}]
  %s4 = inlined_call_operand.vmem [shape: f32[128,16], index: 4, kind: input, shape index: {}]
  %s5 = inlined_call_operand.vmem [shape: f32[16,1], index: 5, kind: output, shape index: {}]
  %s6 = sld [smem:[#allocation0]]
  $region53: #{tpu_custom_call.1} parent=0
    _
  %s8 = ssub.s32 1, %s6
  %s9 = scalar_select 0, %s8, %s6
  loop: start=0, step=1, limit=4
  $region2: #{tpu_custom_call.1} parent=0 // loop_pre_header
    _
  $region3: #{tpu_custom_call.1} parent=0 // loop_header
    %s11 = sphi 0, %s15
    %p12 = scmp.ge.s32.totalorder %s11, 4
    %s21 = sphi 0, %s23
    %s24 = sphi 0, %s21
    %s25 = sphi 0, %s24
    %s41 = sphi 0, %s25
    %s45 = sphi 0, %s45
    %s47 = sphi 0, %s45
    %s48 = sphi 0, %s47
    %s62 = sphi 0, %s48
    %s68 = sphi 0, %s70
    %s71 = sphi 0, %s68
    %s72 = sphi 0, %s71
    %s88 = sphi 0, %s72
    %s94 = sphi 0, %s96
    %s97 = sphi 0, %s94
    %s98 = sphi 0, %s97
    %s114 = sphi 0, %s98
    %s118 = sphi 0, %s118
    %s120 = sphi 0, %s118
    %s121 = sphi 0, %s120
    %s135 = sphi 0, %s121
    %s141 = sphi 0, %s143
    %s144 = sphi 0, %s141
    %s145 = sphi 0, %s144
    %s161 = sphi 0, %s145
  $region4: #{tpu_custom_call.1} parent=0 // loop_header_branch
    %14 = sbr.rel (%p12) target = $region8
  $region5: #{tpu_custom_call.1} parent=0 // loop_body
    %s16 = ssub.s32 %s11, 1
    %s17 = ssub.s32 %s11, 2
    %s18 = sadd.s32 %s11, 1
    %s19 = ssub.s32 %s11, %s18
    %p20 = scmp.eq.s32.totalorder %s19, 0
    %s22 = sadd.s32 %s21, 1
    %s23 = scalar_select %p20, %s21, %s22
    %p26 = pneg %p20
    %p27 = scmp.eq.s32.totalorder %s11, 1
    %p28 = por %p26, %p27
    %p29 = scmp.ne.s32.totalorder %s21, %s24
    %p30 = scmp.eq.s32.totalorder %s11, 0
    %p31 = por %p29, %p30
    %p32 = scmp.ne.s32.totalorder %s21, %s24
    %p33 = scmp.eq.s32.totalorder %s16, 1
    %p34 = por %p32, %p33
    %p35 = scmp.ne.s32.totalorder %s24, %s25
    %p36 = scmp.eq.s32.totalorder %s16, 0
    %p37 = por %p35, %p36
    %p38 = scmp.ne.s32.totalorder %s24, %s25
    %p39 = scmp.eq.s32.totalorder %s17, 1
    %p40 = por %p38, %p39
    %p42 = scmp.ne.s32.totalorder %s25, %s41
    %p43 = scmp.eq.s32.totalorder %s17, 0
    %p44 = por %p42, %p43
    %s46 = sadd.s32 %s45, 1
    %p49 = scmp.eq.s32.totalorder %s11, 1
    %p50 = scmp.ne.s32.totalorder %s45, %s47
    %p51 = scmp.eq.s32.totalorder %s11, 0
    %p52 = por %p50, %p51
    %p53 = scmp.ne.s32.totalorder %s45, %s47
    %p54 = scmp.eq.s32.totalorder %s16, 1
    %p55 = por %p53, %p54
    %p56 = scmp.ne.s32.totalorder %s47, %s48
    %p57 = scmp.eq.s32.totalorder %s16, 0
    %p58 = por %p56, %p57
    %p59 = scmp.ne.s32.totalorder %s47, %s48
    %p60 = scmp.eq.s32.totalorder %s17, 1
    %p61 = por %p59, %p60
    %p63 = scmp.ne.s32.totalorder %s48, %s62
    %p64 = scmp.eq.s32.totalorder %s17, 0
    %p65 = por %p63, %p64
    %s66 = ssub.s32 %s11, %s18
    %p67 = scmp.eq.s32.totalorder %s66, 0
    %s69 = sadd.s32 %s68, 1
    %s70 = scalar_select %p67, %s68, %s69
    %p73 = pneg %p67
    %p74 = scmp.eq.s32.totalorder %s11, 1
    %p75 = por %p73, %p74
    %p76 = scmp.ne.s32.totalorder %s68, %s71
    %p77 = scmp.eq.s32.totalorder %s11, 0
    %p78 = por %p76, %p77
    %p79 = scmp.ne.s32.totalorder %s68, %s71
    %p80 = scmp.eq.s32.totalorder %s16, 1
    %p81 = por %p79, %p80
    %p82 = scmp.ne.s32.totalorder %s71, %s72
    %p83 = scmp.eq.s32.totalorder %s16, 0
    %p84 = por %p82, %p83
    %p85 = scmp.ne.s32.totalorder %s71, %s72
    %p86 = scmp.eq.s32.totalorder %s17, 1
    %p87 = por %p85, %p86
    %p89 = scmp.ne.s32.totalorder %s72, %s88
    %p90 = scmp.eq.s32.totalorder %s17, 0
    %p91 = por %p89, %p90
    %s92 = ssub.s32 %s11, %s18
    %p93 = scmp.eq.s32.totalorder %s92, 0
    %s95 = sadd.s32 %s94, 1
    %s96 = scalar_select %p93, %s94, %s95
    %p99 = pneg %p93
    %p100 = scmp.eq.s32.totalorder %s11, 1
    %p101 = por %p99, %p100
    %p102 = scmp.ne.s32.totalorder %s94, %s97
    %p103 = scmp.eq.s32.totalorder %s11, 0
    %p104 = por %p102, %p103
    %p105 = scmp.ne.s32.totalorder %s94, %s97
    %p106 = scmp.eq.s32.totalorder %s16, 1
    %p107 = por %p105, %p106
    %p108 = scmp.ne.s32.totalorder %s97, %s98
    %p109 = scmp.eq.s32.totalorder %s16, 0
    %p110 = por %p108, %p109
    %p111 = scmp.ne.s32.totalorder %s97, %s98
    %p112 = scmp.eq.s32.totalorder %s17, 1
    %p113 = por %p111, %p112
    %p115 = scmp.ne.s32.totalorder %s98, %s114
    %p116 = scmp.eq.s32.totalorder %s17, 0
    %p117 = por %p115, %p116
    %s119 = sadd.s32 %s118, 1
    %p122 = scmp.eq.s32.totalorder %s11, 1
    %p123 = scmp.ne.s32.totalorder %s118, %s120
    %p124 = scmp.eq.s32.totalorder %s11, 0
    %p125 = por %p123, %p124
    %p126 = scmp.ne.s32.totalorder %s118, %s120
    %p127 = scmp.eq.s32.totalorder %s16, 1
    %p128 = por %p126, %p127
    %p129 = scmp.ne.s32.totalorder %s120, %s121
    %p130 = scmp.eq.s32.totalorder %s16, 0
    %p131 = por %p129, %p130
    %p132 = scmp.ne.s32.totalorder %s120, %s121
    %p133 = scmp.eq.s32.totalorder %s17, 1
    %p134 = por %p132, %p133
    %p136 = scmp.ne.s32.totalorder %s121, %s135
    %p137 = scmp.eq.s32.totalorder %s17, 0
    %p138 = por %p136, %p137
    %s139 = ssub.s32 %s11, %s18
    %p140 = scmp.eq.s32.totalorder %s139, 0
    %s142 = sadd.s32 %s141, 1
    %s143 = scalar_select %p140, %s141, %s142
    %p146 = pneg %p140
    %p147 = scmp.eq.s32.totalorder %s11, 1
    %p148 = por %p146, %p147
    %p149 = scmp.ne.s32.totalorder %s141, %s144
    %p150 = scmp.eq.s32.totalorder %s11, 0
    %p151 = por %p149, %p150
    %p152 = scmp.ne.s32.totalorder %s141, %s144
    %p153 = scmp.eq.s32.totalorder %s16, 1
    %p154 = por %p152, %p153
    %p155 = scmp.ne.s32.totalorder %s144, %s145
    %p156 = scmp.eq.s32.totalorder %s16, 0
    %p157 = por %p155, %p156
    %p158 = scmp.ne.s32.totalorder %s144, %s145
    %p159 = scmp.eq.s32.totalorder %s17, 1
    %p160 = por %p158, %p159
    %p162 = scmp.ne.s32.totalorder %s145, %s161
    %p163 = scmp.eq.s32.totalorder %s17, 0
    %p164 = por %p162, %p163
    %p165 = scmp.le.s32.totalorder 1, %s11
    %p166 = scmp.lt.s32.totalorder %s11, 3
    %p167 = pnand %p165, %p166
    %p168 = pneg %p167
    // Predicated region
    $region9: #{tpu_custom_call.1} parent=5 // pred_check
      _
    $region10: #{tpu_custom_call.1} parent=5 // pred_check_branch
      %170 = sbr.rel (%p167) target = $region12
    $region11: #{tpu_custom_call.1} parent=5 // pred_region
      %s171 = ssub.s32 %s11, 1
      // Predicated region
      $region13: #{tpu_custom_call.1} parent=11 // pred_check
        %p172 = pneg %p58
      $region14: #{tpu_custom_call.1} parent=11 // pred_check_branch
        %174 = sbr.rel (%p172) target = $region16
      $region15: #{tpu_custom_call.1} parent=11 // pred_region
        _
      $region16: #{tpu_custom_call.1} parent=11 // pred_fallthru
        _
      // Predicated region
      $region17: #{tpu_custom_call.1} parent=11 // pred_check
        %p175 = pneg %p131
      $region18: #{tpu_custom_call.1} parent=11 // pred_check_branch
        %177 = sbr.rel (%p175) target = $region20
      $region19: #{tpu_custom_call.1} parent=11 // pred_region
        _
      $region20: #{tpu_custom_call.1} parent=11 // pred_fallthru
        _
    $region12: #{tpu_custom_call.1} parent=5 // pred_fallthru
      _
    %p178 = scmp.lt.s32.totalorder %s11, 2
    // Predicated region
    $region21: #{tpu_custom_call.1} parent=5 // pred_check
      %p179 = pneg %p178
    $region22: #{tpu_custom_call.1} parent=5 // pred_check_branch
      %181 = sbr.rel (%p179) target = $region24
    $region23: #{tpu_custom_call.1} parent=5 // pred_region
      // Predicated region
      $region25: #{tpu_custom_call.1} parent=23 // pred_check
        %p182 = pneg %p31
      $region26: #{tpu_custom_call.1} parent=23 // pred_check_branch
        %184 = sbr.rel (%p182) target = $region28
      $region27: #{tpu_custom_call.1} parent=23 // pred_region
        %p185 = scmp.lt.s32.totalorder %s11, 1
        %s186 = scalar_select %p185, %s11, 1
        %s187 = smul.addr %s186, 8
        %s188 = scalar_lea.vmem %s0, %s187
      $region28: #{tpu_custom_call.1} parent=23 // pred_fallthru
        _
      // Predicated region
      $region29: #{tpu_custom_call.1} parent=23 // pred_check
        %p189 = pneg %p78
      $region30: #{tpu_custom_call.1} parent=23 // pred_check_branch
        %191 = sbr.rel (%p189) target = $region32
      $region31: #{tpu_custom_call.1} parent=23 // pred_region
        %p192 = scmp.lt.s32.totalorder %s11, 1
        %s193 = scalar_select %p192, %s11, 1
        %s194 = smul.addr %s193, 8
        %s195 = scalar_lea.vmem %s2, %s194
      $region32: #{tpu_custom_call.1} parent=23 // pred_fallthru
        _
      // Predicated region
      $region33: #{tpu_custom_call.1} parent=23 // pred_check
        %p196 = pneg %p104
      $region34: #{tpu_custom_call.1} parent=23 // pred_check_branch
        %198 = sbr.rel (%p196) target = $region36
      $region35: #{tpu_custom_call.1} parent=23 // pred_region
        %p199 = scmp.lt.s32.totalorder %s11, 1
        %s200 = scalar_select %p199, %s11, 1
        %s201 = smul.addr %s200, 8
        %s202 = scalar_lea.vmem %s3, %s201
      $region36: #{tpu_custom_call.1} parent=23 // pred_fallthru
        _
    $region24: #{tpu_custom_call.1} parent=5 // pred_fallthru
      _
    %p203 = scmp.le.s32.totalorder 1, %s11
    %p204 = scmp.lt.s32.totalorder %s11, 3
    %p205 = pnand %p203, %p204
    %p206 = pneg %p205
    // Predicated region
    $region37: #{tpu_custom_call.1} parent=5 // pred_check
      _
    $region38: #{tpu_custom_call.1} parent=5 // pred_check_branch
      %208 = sbr.rel (%p205) target = $region40
    $region39: #{tpu_custom_call.1} parent=5 // pred_region
      %s209 = ssub.s32 %s11, 1
      %p210 = scmp.lt.s32.totalorder %s16, 1
      %s211 = scalar_select %p210, %s16, 1
      %s212 = smul.addr %s211, 8
      %s213 = scalar_lea.vmem %s0, %s212
      %p214 = pneg %p37
      %p215 = pneg %p34
      %p216 = pneg %p58
      %p217 = pneg %p55
      %p218 = scmp.lt.s32.totalorder %s16, 1
      %s219 = scalar_select %p218, %s16, 1
      %s220 = smul.addr %s219, 8
      %s221 = scalar_lea.vmem %s2, %s220
      %p222 = pneg %p84
      %p223 = pneg %p81
      %p224 = scmp.lt.s32.totalorder %s16, 1
      %s225 = scalar_select %p224, %s16, 1
      %s226 = smul.addr %s225, 8
      %s227 = scalar_lea.vmem %s3, %s226
      %p228 = pneg %p110
      %p229 = pneg %p107
      %p230 = pneg %p131
      %p231 = pneg %p128
      %p232 = pneg %p157
      %p233 = pneg %p154
      %p234 = scmp.lt.s32.totalorder %s16, 1
      %s235 = scalar_select %p234, %s16, 1
      %s236 = smul.addr %s235, 8
      %s237 = scalar_lea.vmem %s5, %s236
      %p238 = scmp.lt.s32.totalorder %s16, 1
      %s239 = scalar_select %p238, %s16, 1
      %s240 = smul.addr %s239, 8
      %s241 = scalar_lea.vmem %s0, %s240
      %p242 = scmp.lt.s32.totalorder %s16, 1
      %s243 = scalar_select %p242, %s16, 1
      %s244 = smul.addr %s243, 8
      %s245 = scalar_lea.vmem %s2, %s244
      %p246 = scmp.lt.s32.totalorder %s16, 1
      %s247 = scalar_select %p246, %s16, 1
      %s248 = smul.addr %s247, 8
      %s249 = scalar_lea.vmem %s3, %s248
      %p250 = scmp.lt.s32.totalorder %s16, 1
      %s251 = scalar_select %p250, %s16, 1
      %s252 = smul.addr %s251, 8
      %s253 = scalar_lea.vmem %s5, %s252
      %v254 = vld [vmem:[%s249] sm:$0xff]
      %v255 = vmul.f32 %v254, 14.285714
      %v256 = vld [vmem:[%s4] sm:$0xff]
      %v257 = vld [vmem:[%s4 + $0x8] sm:$0xff]
      %v258 = vld [vmem:[%s4 + $0x10] sm:$0xff]
      %v259 = vld [vmem:[%s4 + $0x18] sm:$0xff]
      %v260 = vld [vmem:[%s4 + $0x20] sm:$0xff]
      %v261 = vld [vmem:[%s4 + $0x28] sm:$0xff]
      %v262 = vld [vmem:[%s4 + $0x30] sm:$0xff]
      %v263 = vld [vmem:[%s4 + $0x38] sm:$0xff]
      %v264 = vld [vmem:[%s4 + $0x40] sm:$0xff]
      %v265 = vld [vmem:[%s4 + $0x48] sm:$0xff]
      %v266 = vld [vmem:[%s4 + $0x50] sm:$0xff]
      %v267 = vld [vmem:[%s4 + $0x58] sm:$0xff]
      %v268 = vld [vmem:[%s4 + $0x60] sm:$0xff]
      %v269 = vld [vmem:[%s4 + $0x68] sm:$0xff]
      %v270 = vld [vmem:[%s4 + $0x70] sm:$0xff]
      %v271 = vld [vmem:[%s4 + $0x78] sm:$0xff]
      %272 = vmatprep.subr.mxu0 0.0
      %273 = vmatpush1.msra.mxu0 %v256
      %274 = vmatprep.subr.mxu0 0.0
      %275 = vmatpush1.msra.mxu0 %v257
      %276 = vmatprep.subr.mxu0 0.0
      %277 = vmatpush1.msra.mxu0 %v258
      %278 = vmatprep.subr.mxu0 0.0
      %279 = vmatpush1.msra.mxu0 %v259
      %280 = vmatprep.subr.mxu0 0.0
      %281 = vmatpush1.msra.mxu0 %v260
      %282 = vmatprep.subr.mxu0 0.0
      %283 = vmatpush1.msra.mxu0 %v261
      %284 = vmatprep.subr.mxu0 0.0
      %285 = vmatpush1.msra.mxu0 %v262
      %286 = vmatprep.subr.mxu0 0.0
      %287 = vmatpush1.msra.mxu0 %v263
      %288 = vmatprep.subr.mxu0 0.0
      %289 = vmatpush1.msra.mxu0 %v264
      %290 = vmatprep.subr.mxu0 0.0
      %291 = vmatpush1.msra.mxu0 %v265
      %292 = vmatprep.subr.mxu0 0.0
      %293 = vmatpush1.msra.mxu0 %v266
      %294 = vmatprep.subr.mxu0 0.0
      %295 = vmatpush1.msra.mxu0 %v267
      %296 = vmatprep.subr.mxu0 0.0
      %297 = vmatpush1.msra.mxu0 %v268
      %298 = vmatprep.subr.mxu0 0.0
      %299 = vmatpush1.msra.mxu0 %v269
      %300 = vmatprep.subr.mxu0 0.0
      %301 = vmatpush1.msra.mxu0 %v270
      %302 = vmatprep.subr.mxu0 0.0
      %303 = vmatpush1.msra.mxu0 %v271
      %304 = vmatprep.subr.mxu0 0.0
      %305 = vmatpush1.msra.mxu0 0.0
      %306 = vmatprep.subr.mxu0 0.0
      %307 = vmatpush1.msra.mxu0 0.0
      %308 = vmatprep.subr.mxu0 0.0
      %309 = vmatpush1.msra.mxu0 0.0
      %310 = vmatprep.subr.mxu0 0.0
      %311 = vmatpush1.msra.mxu0 0.0
      %312 = vmatprep.subr.mxu0 0.0
      %313 = vmatpush1.msra.mxu0 0.0
      %314 = vmatprep.subr.mxu0 0.0
      %315 = vmatpush1.msra.mxu0 0.0
      %316 = vmatprep.subr.mxu0 0.0
      %317 = vmatpush1.msra.mxu0 0.0
      %318 = vmatprep.subr.mxu0 0.0
      %319 = vmatpush1.msra.mxu0 0.0
      %320 = vmatprep.subr.mxu0 0.0
      %321 = vmatpush1.msra.mxu0 0.0
      %322 = vmatprep.subr.mxu0 0.0
      %323 = vmatpush1.msra.mxu0 0.0
      %324 = vmatprep.subr.mxu0 0.0
      %325 = vmatpush1.msra.mxu0 0.0
      %326 = vmatprep.subr.mxu0 0.0
      %327 = vmatpush1.msra.mxu0 0.0
      %328 = vmatprep.subr.mxu0 0.0
      %329 = vmatpush1.msra.mxu0 0.0
      %330 = vmatprep.subr.mxu0 0.0
      %331 = vmatpush1.msra.mxu0 0.0
      %332 = vmatprep.subr.mxu0 0.0
      %333 = vmatpush1.msra.mxu0 0.0
      %334 = vmatprep.subr.mxu0 0.0
      %335 = vmatpush1.msra.mxu0 0.0
      %336 = vmatprep.mubr.f32.mxu0 0.0
      %337 = vmatmul.mubr.f32.gmra.mrb[0].mxu0 %v255
      %v338 = vpop.f32.mrb[0].mxu0
      %v339 = vadd.f32 0.0, %v338
      %v340 = vpop.f32.mrb[0].mxu0
      %341 = vdwg.mxu0
      %v342 = vld [vmem:[%s241] sm:$0xff]
      %v343 = vld [vmem:[%s1] sm:$0x1]
      %344 = vset.pattern.permute.xlu0 0
      %345 = vperm.xlu0 %344, %v342
      %v346 = vpop.permute.xlu0 %345
      %v347 = vlaneseq
      %v348 = vshrl.u32 %v347, 7
      %v349 = vsub.s32 0, %v348
      %v350 = vrot.slane %v343, %v349
      %vm351 = vcmp.eq.s32.totalorder %v346, %v350
      %v352 = vsel %vm351, 1, 0
      %v353 = vcvt.s32.f32 %v352
      %s354 = smul.u32 %s16, 8
      %v355 = vlaneseq
      %v356 = vshrl.u32 %v355, 7
      %v357 = vstv %s354
      %v358 = vadd.s32 %v357, %v356
      %v359 = vlaneseq
      %v360 = vand.u32 %v359, 127
      %vm361 = vcmp.ne.s32.totalorder %v358, %v360
      %v362 = vsel %vm361, 1, 0
      %v363 = vcvt.s32.f32 %v362
      %v364 = vmul.f32 %v353, %v363
      %v365 = vld [vmem:[%s245] sm:$0xff]
      %vm366 = vcmask 130048
      %v367 = vsel %vm366, %v339, -inf
      %368 = vmax.xlane.f32.xlu0 %v367
      %v369 = vpop.xlane.xlu0 %368
      %v370 = vsub.f32 %v339, %v369
      %v371 = vmul.f32 %v370, 1.442695
      %v372 = vpow.pop %v371
      %v373 = vmul.f32 %v372, %v363
      %v374 = vsel %vm366, %v373, 0.0
      %375 = vadd.xlane.f32.xlu0 %v374
      %v376 = vpop.xlane.xlu0 %375
      %v377 = vmul.f32 %v364, %v370
      %v378 = vsel %vm366, %v377, 0.0
      %379 = vadd.xlane.f32.xlu0 %v378
      %v380 = vpop.xlane.xlu0 %379
      %v381 = vlog2.pop %v376
      %v382 = vmul.f32 %v381, 0.6931472
      %v383 = vrcp.pop %v365
      %v384 = vmul.f32 %v380, %v383
      %v385 = vsub.f32 %v382, %v384
      %vm386 = vcmask 7168
      %387 = vst.msk [vmem:[%s253] sm:$0xff] %vm386, %v385
      %p388 = scmp.lt.s32.totalorder %s16, 1
      %s389 = scalar_select %p388, %s16, 1
      %s390 = smul.addr %s389, 8
      %s391 = scalar_lea.vmem %s5, %s390
      // Predicated region
      $region41: #{tpu_custom_call.1} parent=39 // pred_check
        %p392 = pneg %p154
      $region42: #{tpu_custom_call.1} parent=39 // pred_check_branch
        %394 = sbr.rel (%p392) target = $region44
      $region43: #{tpu_custom_call.1} parent=39 // pred_region
        _
      $region44: #{tpu_custom_call.1} parent=39 // pred_fallthru
        _
    $region40: #{tpu_custom_call.1} parent=5 // pred_fallthru
      _
    %p395 = scmp.le.s32.totalorder 2, %s11
    // Predicated region
    $region45: #{tpu_custom_call.1} parent=5 // pred_check
      %p396 = pneg %p395
    $region46: #{tpu_custom_call.1} parent=5 // pred_check_branch
      %398 = sbr.rel (%p396) target = $region48
    $region47: #{tpu_custom_call.1} parent=5 // pred_region
      %s399 = ssub.s32 %s11, 2
      // Predicated region
      $region49: #{tpu_custom_call.1} parent=47 // pred_check
        %p400 = pneg %p160
      $region50: #{tpu_custom_call.1} parent=47 // pred_check_branch
        %402 = sbr.rel (%p400) target = $region52
      $region51: #{tpu_custom_call.1} parent=47 // pred_region
        %p403 = scmp.lt.s32.totalorder %s17, 1
        %s404 = scalar_select %p403, %s17, 1
        %s405 = smul.addr %s404, 8
        %s406 = scalar_lea.vmem %s5, %s405
      $region52: #{tpu_custom_call.1} parent=47 // pred_fallthru
        _
    $region48: #{tpu_custom_call.1} parent=5 // pred_fallthru
      _
  $region6: #{tpu_custom_call.1} parent=0 // loop_footer
    %s15 = sadd.s32 1, %s11
  $region7: #{tpu_custom_call.1} parent=0 // loop_footer_branch
    %10 = sbr.rel target = $region3
  $region8: #{tpu_custom_call.1} parent=0 // loop_exit
    _

</llo_original>
